<compile_context>
chip_gen: v6e
topology: v6e:2x2x1
jax: 0.10.0
libtpu: 0.0.40
codegen_flags: <defaults>
</compile_context>

<pallas_src>
import functools

import jax
import jax.numpy as jnp
from jax import lax
from jax.experimental import pallas as pl
from jax.experimental.pallas import tpu as pltpu

_LANE = 128
_SUBLANE = 8


def _round_up(x, m):
    return ((x + m - 1) // m) * m


# ---------------------------------------------------------------------------
# Kernel 1: batched input projection  gates_x = X @ W_ih^T + b  (one big MXU
# matmul over all T*B rows; no time dependence).
# ---------------------------------------------------------------------------
def _input_proj_kernel(x_ref, w_ref, b_ref, o_ref):
    o_ref[...] = (
        jnp.dot(x_ref[...], w_ref[...], preferred_element_type=jnp.float32)
        + b_ref[...]
    ).astype(o_ref.dtype)


# ---------------------------------------------------------------------------
# Kernel 2: the sequential recurrence.  One grid step == TS timesteps; h/c are
# carried in VMEM scratch across grid steps.
# ---------------------------------------------------------------------------
def _lstm_recurrent_kernel(gx_ref, h0_ref, c0_ref, whh_ref,
                           out_ref, hn_ref, cn_ref,
                           h_scratch, c_scratch,
                           *, hidden, hidden_pad, ts, seq_len,
                           weight_dtype, use_layer_norm):
    Hp = hidden_pad
    chunk = pl.program_id(0)
    needs_mask = (seq_len % ts) != 0          # static Python bool

    @pl.when(chunk == 0)
    def _init():
        h_scratch[...] = h0_ref[...]
        c0 = c0_ref[...]
        if use_layer_norm:
            # LayerNorm(elementwise_affine=False, eps=1e-5) over the true H
            # lanes only; padded lanes/rows stay exactly 0.
            lane = lax.broadcasted_iota(jnp.int32, c0.shape, 1)
            valid = (lane < hidden).astype(jnp.float32)
            inv_h = 1.0 / hidden
            mean = jnp.sum(c0, axis=-1, keepdims=True) * inv_h   # pads are 0
            diff = (c0 - mean) * valid
            var = jnp.sum(diff * diff, axis=-1, keepdims=True) * inv_h
            c0 = diff * lax.rsqrt(var + 1e-5)
        c_scratch[...] = c0

    # Fully-unrolled inner time loop (TS is small and static); indices are
    # static so every gx/out access is an aligned, unmasked load/store.
    for s in range(ts):
        h = h_scratch[...]
        # Re-read W_hh^T from VMEM per step: keeps vreg live ranges small and
        # the load is hidden under the MXU push.
        gates = gx_ref[s] + jnp.dot(h.astype(weight_dtype), whh_ref[...],
                                    preferred_element_type=jnp.float32)

        # Gate slices fall exactly on 128-lane vreg boundaries (Hp % 128 == 0).
        i_g = jax.nn.sigmoid(gates[:, 0 * Hp:1 * Hp])
        f_g = jax.nn.sigmoid(gates[:, 1 * Hp:2 * Hp])
        g_g = jnp.tanh(gates[:, 2 * Hp:3 * Hp])
        o_g = jax.nn.sigmoid(gates[:, 3 * Hp:4 * Hp])

        c_new = f_g * c_scratch[...] + i_g * g_g
        h_new = o_g * jnp.tanh(c_new)

        if needs_mask:
            # Padded tail timesteps (t >= seq_len) must not advance the state.
            @pl.when(chunk * ts + s < seq_len)
            def _upd(h_new=h_new, c_new=c_new):
                h_scratch[...] = h_new
                c_scratch[...] = c_new
        else:
            h_scratch[...] = h_new
            c_scratch[...] = c_new

        out_ref[s] = h_new.astype(out_ref.dtype)

    # Final states: resident outputs, written once on the last grid step only.
    @pl.when(chunk == pl.num_programs(0) - 1)
    def _final():
        hn_ref[...] = h_scratch[...]
        cn_ref[...] = c_scratch[...]


def agent_temporal_model_forward(inputs, hidden_state, agent_types, params,
                                 use_layer_norm=False, *,
                                 timestep_chunk=16,
                                 weight_dtype=jnp.float32):
    """Pallas-backed forward of AgentTemporalModel (type-agnostic LSTM).

    inputs       : (T, B, input_size) float32
    hidden_state : (h0, c0), each (1, B, hidden_size) float32
    agent_types  : unused (type-agnostic model), kept for API parity
    params       : PyTorch-convention LSTM weights (gate order [i, f, g, o])
    Returns (output, (h_n, c_n)) matching nn.LSTM semantics.
    """
    del agent_types  # type-agnostic implementation
    h0, c0 = hidden_state
    T, B, D = inputs.shape
    H = h0.shape[-1]
    Hp = _round_up(H, _LANE)                 # lane-dense padded hidden size
    Bp = _round_up(B, _SUBLANE)              # sublane-dense padded batch

    TS = max(1, min(timestep_chunk, T))      # timesteps per grid step
    n_chunks = pl.cdiv(T, TS)
    T_pad = n_chunks * TS

    # --- fused weights, re-laid-out so each gate occupies its own 128-lane
    #     aligned block of the padded 4*Hp axis. Bias is fused into the input
    #     projection (no per-step bias add).
    w_ih_t = params["weight_ih_l0"].T.astype(jnp.float32)   # (D, 4H)
    w_hh_t = params["weight_hh_l0"].T.astype(jnp.float32)   # (H, 4H)
    bias = (params["bias_ih_l0"] + params["bias_hh_l0"]).reshape(1, 4 * H)

    def _pad_gate_cols(w, row_pad=0):
        blocks = []
        for k in range(4):
            blk = w[:, k * H:(k + 1) * H]
            blocks.append(jnp.pad(blk, ((0, row_pad), (0, Hp - H))))
        return jnp.concatenate(blocks, axis=1)

    w_ih_p = _pad_gate_cols(w_ih_t).astype(weight_dtype)                  # (D, 4Hp)
    w_hh_p = _pad_gate_cols(w_hh_t, row_pad=Hp - H).astype(weight_dtype)  # (Hp, 4Hp)
    bias_p = _pad_gate_cols(bias).astype(jnp.float32)                     # (1, 4Hp)

    h0_p = jnp.pad(h0[0].astype(jnp.float32), ((0, Bp - B), (0, Hp - H)))  # (Bp, Hp)
    c0_p = jnp.pad(c0[0].astype(jnp.float32), ((0, Bp - B), (0, Hp - H)))  # (Bp, Hp)

    # --- 1) hoisted input projection over all T_pad*Bp rows (one batched matmul).
    R = T_pad * Bp
    R_block = min(512, _round_up(R, _SUBLANE))
    R_pad = _round_up(R, R_block)

    x_p = jnp.pad(inputs.astype(jnp.float32),
                  ((0, T_pad - T), (0, Bp - B), (0, 0))).reshape(R, D)
    x_p = jnp.pad(x_p, ((0, R_pad - R), (0, 0))).astype(weight_dtype)

    gates_flat = pl.pallas_call(
        _input_proj_kernel,
        out_shape=jax.ShapeDtypeStruct((R_pad, 4 * Hp), jnp.float32),
        grid_spec=pltpu.PrefetchScalarGridSpec(
            num_scalar_prefetch=0,
            grid=(R_pad // R_block,),
            in_specs=[
                pl.BlockSpec((R_block, D), lambda r: (r, 0)),      # X rows
                pl.BlockSpec((D, 4 * Hp), lambda r: (0, 0)),       # W_ih^T
                pl.BlockSpec((1, 4 * Hp), lambda r: (0, 0)),       # fused bias
            ],
            out_specs=pl.BlockSpec((R_block, 4 * Hp), lambda r: (r, 0)),
        ),
        compiler_params=pltpu.CompilerParams(
            dimension_semantics=("parallel",)),
    )(x_p, w_ih_p, bias_p)
    gates_x = gates_flat[:R].reshape(T_pad, Bp, 4 * Hp)

    # --- 2) recurrent kernel over chunks of TS timesteps.
    kernel = functools.partial(
        _lstm_recurrent_kernel, hidden=H, hidden_pad=Hp, ts=TS, seq_len=T,
        weight_dtype=weight_dtype, use_layer_norm=use_layer_norm)

    out_shapes = (
        jax.ShapeDtypeStruct((T_pad, Bp, Hp), jnp.float32),  # output sequence
        jax.ShapeDtypeStruct((Bp, Hp), jnp.float32),         # h_n
        jax.ShapeDtypeStruct((Bp, Hp), jnp.float32),         # c_n
    )

    grid_spec = pltpu.PrefetchScalarGridSpec(
        num_scalar_prefetch=0,
        grid=(n_chunks,),
        in_specs=[
            pl.BlockSpec((TS, Bp, 4 * Hp), lambda c: (c, 0, 0)),  # gates_x chunk
            pl.BlockSpec((Bp, Hp), lambda c: (0, 0)),             # h0 (tiny, resident)
            pl.BlockSpec((Bp, Hp), lambda c: (0, 0)),             # c0 (tiny, resident)
            pl.BlockSpec((Hp, 4 * Hp), lambda c: (0, 0)),         # W_hh^T (resident)
        ],
        out_specs=[
            pl.BlockSpec((TS, Bp, Hp), lambda c: (c, 0, 0)),      # per-chunk outputs
            pl.BlockSpec((Bp, Hp), lambda c: (0, 0)),             # h_n (final write)
            pl.BlockSpec((Bp, Hp), lambda c: (0, 0)),             # c_n (final write)
        ],
        scratch_shapes=[
            pltpu.VMEM((Bp, Hp), jnp.float32),                    # h carry
            pltpu.VMEM((Bp, Hp), jnp.float32),                    # c carry
        ],
    )

    out_p, hn_p, cn_p = pl.pallas_call(
        kernel,
        out_shape=out_shapes,
        grid_spec=grid_spec,
        compiler_params=pltpu.CompilerParams(
            dimension_semantics=("arbitrary",)),                  # sequential in time
    )(gates_x, h0_p, c0_p, w_hh_p)

    out = out_p[:T, :B, :H]
    h_n = hn_p[None, :B, :H]
    c_n = cn_p[None, :B, :H]
    return out, (h_n, c_n)


def _reference_forward(inputs, hidden_state, params, use_layer_norm=False):
    """Pure-JAX reference (mirrors torch nn.LSTM equations) for verification."""
    h0, c0 = hidden_state
    H = h0.shape[-1]
    w_ih = params["weight_ih_l0"]
    w_hh = params["weight_hh_l0"]
    b = params["bias_ih_l0"] + params["bias_hh_l0"]

    c = c0[0]
    if use_layer_norm:
        mean = jnp.mean(c, axis=-1, keepdims=True)
        var = jnp.mean((c - mean) ** 2, axis=-1, keepdims=True)
        c = (c - mean) * lax.rsqrt(var + 1e-5)
    h = h0[0]

    def step(carry, x_t):
        h, c = carry
        gates = x_t @ w_ih.T + h @ w_hh.T + b
        i = jax.nn.sigmoid(gates[:, 0 * H:1 * H])
        f = jax.nn.sigmoid(gates[:, 1 * H:2 * H])
        g = jnp.tanh(gates[:, 2 * H:3 * H])
        o = jax.nn.sigmoid(gates[:, 3 * H:4 * H])
        c = f * c + i * g
        h = o * jnp.tanh(c)
        return (h, c), h

    (h_n, c_n), outs = lax.scan(step, (h, c), inputs)
    return outs, (h_n[None], c_n[None])


if __name__ == "__main__":
    # Small, module-consistent shapes.
    T, B = 8, 4
    input_size, hidden_size = 16, 32
    num_agent_types = 3  # unused in the type-agnostic forward

    key = jax.random.PRNGKey(0)
    k = jax.random.split(key, 8)

    scale = 1.0 / jnp.sqrt(hidden_size)
    params = {
        "weight_ih_l0": scale * jax.random.normal(
            k[0], (4 * hidden_size, input_size), jnp.float32),
        "weight_hh_l0": scale * jax.random.normal(
            k[1], (4 * hidden_size, hidden_size), jnp.float32),
        "bias_ih_l0": scale * jax.random.normal(
            k[2], (4 * hidden_size,), jnp.float32),
        "bias_hh_l0": scale * jax.random.normal(
            k[3], (4 * hidden_size,), jnp.float32),
    }

    inputs = jax.random.normal(k[4], (T, B, input_size), jnp.float32)
    h0 = jax.random.normal(k[5], (1, B, hidden_size), jnp.float32)
    c0 = jax.random.normal(k[6], (1, B, hidden_size), jnp.float32)
    agent_types = jax.random.randint(k[7], (B,), 0, num_agent_types)

    configs = [
        # (use_layer_norm, timestep_chunk, weight_dtype, tolerance)
        (False, 16, jnp.float32, 1e-3),    # module default path
        (True, 16, jnp.float32, 1e-3),     # LayerNorm on incoming cell state
        (False, 3, jnp.float32, 1e-3),     # exercises T % TS != 0 masking
        (False, 16, jnp.bfloat16, 5e-2),   # bf16 MXU weights (v6e / v7x path)
    ]

    for use_ln, ts, wdt, tol in configs:
        out, (h_n, c_n) = agent_temporal_model_forward(
            inputs, (h0, c0), agent_types, params,
            use_layer_norm=use_ln, timestep_chunk=ts, weight_dtype=wdt)
        jax.block_until_ready((out, h_n, c_n))

        ref_out, (ref_h, ref_c) = _reference_forward(
            inputs, (h0, c0), params, use_layer_norm=use_ln)

        assert out.shape == (T, B, hidden_size)
        assert h_n.shape == (1, B, hidden_size)
        assert c_n.shape == (1, B, hidden_size)
        assert jnp.allclose(out, ref_out, rtol=tol, atol=tol), (use_ln, ts, wdt)
        assert jnp.allclose(h_n, ref_h, rtol=tol, atol=tol), (use_ln, ts, wdt)
        assert jnp.allclose(c_n, ref_c, rtol=tol, atol=tol), (use_ln, ts, wdt)

    print("KERNEL_OK")
</pallas_src>

<mosaic_0001>
module attributes {stable_mosaic.version = 11 : i64} {
  func.func @_input_proj_kernel(%arg0: i32, %arg1: memref<64x16xf32, #tpu.memory_space<vmem>>, %arg2: memref<16x512xf32, #tpu.memory_space<vmem>>, %arg3: memref<1x512xf32, #tpu.memory_space<vmem>>, %arg4: memref<64x512xf32, #tpu.memory_space<vmem>>) attributes {dimension_semantics = [#tpu.dimension_semantics<parallel>], iteration_bounds = array<i64: 1>, scalar_prefetch = 0 : i64, scratch_operands = 0 : i64, tpu.core_type = #tpu.core_type<tc>, window_params = [{transform_indices = @transform_0, window_bounds = array<i64: 64, 16>}, {pipeline_mode = #tpu.pipeline_mode<synchronous>, transform_indices = @transform_1, window_bounds = array<i64: 16, 512>}, {pipeline_mode = #tpu.pipeline_mode<synchronous>, transform_indices = @transform_2, window_bounds = array<i64: 1, 512>}, {transform_indices = @transform_3, window_bounds = array<i64: 64, 512>}]} {
    %c0 = arith.constant 0 : index
    %c0_0 = arith.constant 0 : index
    %0 = vector.load %arg1[%c0, %c0_0] : memref<64x16xf32, #tpu.memory_space<vmem>>, vector<64x16xf32>
    %c0_1 = arith.constant 0 : index
    %c0_2 = arith.constant 0 : index
    %1 = vector.load %arg2[%c0_1, %c0_2] : memref<16x512xf32, #tpu.memory_space<vmem>>, vector<16x512xf32>
    %cst = arith.constant dense<0.000000e+00> : vector<64x512xf32>
    %2 = tpu.matmul %0, %1, %cst {dimension_numbers = #tpu.dot_dimension_numbers<[1], [0], [0], [1], [0, 0, 1, 1], [], []>} : vector<64x16xf32>, vector<16x512xf32>, vector<64x512xf32> -> vector<64x512xf32>
    %c0_3 = arith.constant 0 : index
    %c0_4 = arith.constant 0 : index
    %3 = vector.load %arg3[%c0_3, %c0_4] : memref<1x512xf32, #tpu.memory_space<vmem>>, vector<1x512xf32>
    %4 = vector.broadcast %3 : vector<1x512xf32> to vector<64x512xf32>
    %5 = arith.addf %2, %4 : vector<64x512xf32>
    %c0_5 = arith.constant 0 : index
    %c0_6 = arith.constant 0 : index
    %6 = vector.load %arg4[%c0_5, %c0_6] : memref<64x512xf32, #tpu.memory_space<vmem>>, vector<64x512xf32>
    tpu.vector_store %arg4[%c0_5, %c0_6], %5 {strides = array<i32>} : memref<64x512xf32, #tpu.memory_space<vmem>>, vector<64x512xf32>,
    return
  }
  func.func @transform_0(%arg0: i32) -> (i32, i32) {
    %c0_i32 = arith.constant 0 : i32
    %c0_i32_0 = arith.constant 0 : i32
    return %arg0, %c0_i32 : i32, i32
  }
  func.func @transform_1(%arg0: i32) -> (i32, i32) {
    %c0_i32 = arith.constant 0 : i32
    %c0_i32_0 = arith.constant 0 : i32
    %c0_i32_1 = arith.constant 0 : i32
    return %c0_i32, %c0_i32_0 : i32, i32
  }
  func.func @transform_2(%arg0: i32) -> (i32, i32) {
    %c0_i32 = arith.constant 0 : i32
    %c0_i32_0 = arith.constant 0 : i32
    %c0_i32_1 = arith.constant 0 : i32
    return %c0_i32, %c0_i32_0 : i32, i32
  }
  func.func @transform_3(%arg0: i32) -> (i32, i32) {
    %c0_i32 = arith.constant 0 : i32
    %c0_i32_0 = arith.constant 0 : i32
    return %arg0, %c0_i32 : i32, i32
  }
}

</mosaic_0001>

<llo_original>
// kernel: tpu_custom_call.1
$region0: #{tpu_custom_call.1}
  #allocation0 [shape = 'u32[]', space=smem, size = 0x4, offset = 0x4, fixed_abs, tag = 'smem constant byte address 0x4 - core index']
  #allocation1 [shape = 'u32[144,128]{1,0:T(1,128)}', space=vmem, size = 0x12000, scoped, tag = 'internal scratch']
  %s0 = inlined_call_operand.vmem [shape: f32[64,16], index: 0, kind: input, shape index: {}]
  %s1 = inlined_call_operand.vmem [shape: f32[16,512], index: 1, kind: input, shape index: {}]
  %s2 = inlined_call_operand.vmem [shape: f32[1,512], index: 2, kind: input, shape index: {}]
  %s3 = inlined_call_operand.hbm [shape: f32[64,512], index: 3, kind: output, shape index: {}]
  %s4 = sld [smem:[#allocation0]]
  $region22: #{tpu_custom_call.1} parent=0
    _
  %s6 = ssub.s32 1, %s4
  %s7 = scalar_select 0, %s6, %s4
  $region1: #{tpu_custom_call.1} parent=0
    #allocation2 [shape = 'u8[131072]{0}', space=vmem, size = 0x20000, scoped, tag = 'output window, operand 0, single buffered']
    #allocation3 [shape = 's32[1]{0}', space=sflag, size = 0x4, scoped, tag = 'scoped memory for tpu_custom_call.1']
    %8 = vsyncpa [#allocation3], 0
    // Predicated region
    $region2: #{tpu_custom_call.1} parent=1 // pred_check
      _
    $region3: #{tpu_custom_call.1} parent=1 // pred_check_branch
      %10 = sbr.rel (0) target = $region5
    $region4: #{tpu_custom_call.1} parent=1 // pred_region
      _
    $region5: #{tpu_custom_call.1} parent=1 // pred_fallthru
      _
    // Predicated region
    $region6: #{tpu_custom_call.1} parent=1 // pred_check
      _
    $region7: #{tpu_custom_call.1} parent=1 // pred_check_branch
      %12 = sbr.rel (0) target = $region9
    $region8: #{tpu_custom_call.1} parent=1 // pred_region
      _
    $region9: #{tpu_custom_call.1} parent=1 // pred_fallthru
      _
    // Predicated region
    $region10: #{tpu_custom_call.1} parent=1 // pred_check
      _
    $region11: #{tpu_custom_call.1} parent=1 // pred_check_branch
      %14 = sbr.rel (0) target = $region13
    $region12: #{tpu_custom_call.1} parent=1 // pred_region
      _
    $region13: #{tpu_custom_call.1} parent=1 // pred_fallthru
      _
    %v15 = vld [vmem:[%s0] sm:$0xff]
    %v16 = vld [vmem:[%s0 + $0x8] sm:$0xff]
    %v17 = vld [vmem:[%s0 + $0x10] sm:$0xff]
    %v18 = vld [vmem:[%s0 + $0x18] sm:$0xff]
    %v19 = vld [vmem:[%s0 + $0x20] sm:$0xff]
    %v20 = vld [vmem:[%s0 + $0x28] sm:$0xff]
    %v21 = vld [vmem:[%s0 + $0x30] sm:$0xff]
    %v22 = vld [vmem:[%s0 + $0x38] sm:$0xff]
    %v23 = vld [vmem:[%s1] sm:$0xff]
    %v24 = vld [vmem:[%s1 + $0x8] sm:$0xff]
    %v25 = vld [vmem:[%s1 + $0x10] sm:$0xff]
    %v26 = vld [vmem:[%s1 + $0x18] sm:$0xff]
    %v27 = vld [vmem:[%s1 + $0x20] sm:$0xff]
    %v28 = vld [vmem:[%s1 + $0x28] sm:$0xff]
    %v29 = vld [vmem:[%s1 + $0x30] sm:$0xff]
    %v30 = vld [vmem:[%s1 + $0x38] sm:$0xff]
    %v31 = vld [vmem:[%s2] sm:$0xf]
    %v33 = vlaneseq
    %v34 = vshrl.u32 %v33, 7
    %v35 = vsub.s32 0, %v34
    %v36 = vrot.slane %v31, %v35
    %v37 = vlaneseq
    %v38 = vshrl.u32 %v37, 7
    %v39 = vsub.s32 1, %v38
    %v40 = vrot.slane %v31, %v39
    %v41 = vlaneseq
    %v42 = vshrl.u32 %v41, 7
    %v43 = vsub.s32 2, %v42
    %v44 = vrot.slane %v31, %v43
    %v45 = vlaneseq
    %v46 = vshrl.u32 %v45, 7
    %v47 = vsub.s32 3, %v46
    %v48 = vrot.slane %v31, %v47
    %vm53 = vcmask 130048
    %v55 = vsel %vm53, %v15, 0
    %v58 = vsel %vm53, %v16, 0
    %v61 = vsel %vm53, %v17, 0
    %v64 = vsel %vm53, %v18, 0
    %v67 = vsel %vm53, %v19, 0
    %v70 = vsel %vm53, %v20, 0
    %v73 = vsel %vm53, %v21, 0
    %v76 = vsel %vm53, %v22, 0
    %78 = vmatprep.subr.mxu0 0.0
    %79 = vmatpush1.msra.mxu0 0.0
    %80 = vmatprep.subr.mxu0 0.0
    %81 = vmatpush1.msra.mxu0 0.0
    %82 = vmatprep.subr.mxu0 0.0
    %83 = vmatpush1.msra.mxu0 0.0
    %84 = vmatprep.subr.mxu0 0.0
    %85 = vmatpush1.msra.mxu0 0.0
    %86 = vmatprep.subr.mxu0 0.0
    %87 = vmatpush1.msra.mxu0 0.0
    %88 = vmatprep.subr.mxu0 0.0
    %89 = vmatpush1.msra.mxu0 0.0
    %90 = vmatprep.subr.mxu0 0.0
    %91 = vmatpush1.msra.mxu0 0.0
    %92 = vmatprep.subr.mxu0 0.0
    %93 = vmatpush1.msra.mxu0 0.0
    %94 = vmatprep.subr.mxu0 0.0
    %95 = vmatpush1.msra.mxu0 0.0
    %96 = vmatprep.subr.mxu0 0.0
    %97 = vmatpush1.msra.mxu0 0.0
    %98 = vmatprep.subr.mxu0 0.0
    %99 = vmatpush1.msra.mxu0 0.0
    %100 = vmatprep.subr.mxu0 0.0
    %101 = vmatpush1.msra.mxu0 0.0
    %102 = vmatprep.subr.mxu0 0.0
    %103 = vmatpush1.msra.mxu0 0.0
    %104 = vmatprep.subr.mxu0 0.0
    %105 = vmatpush1.msra.mxu0 0.0
    %106 = vmatprep.subr.mxu0 %v28
    %107 = vmatpush1.msra.mxu0 %v27
    %108 = vmatprep.subr.mxu0 %v24
    %109 = vmatpush1.msra.mxu0 %v23
    %110 = vmatprep.subr.mxu0 0.0
    %111 = vmatpush2.msra.mxu0 0.0
    %112 = vmatprep.subr.mxu0 0.0
    %113 = vmatpush2.msra.mxu0 0.0
    %114 = vmatprep.subr.mxu0 0.0
    %115 = vmatpush2.msra.mxu0 0.0
    %116 = vmatprep.subr.mxu0 0.0
    %117 = vmatpush2.msra.mxu0 0.0
    %118 = vmatprep.subr.mxu0 0.0
    %119 = vmatpush2.msra.mxu0 0.0
    %120 = vmatprep.subr.mxu0 0.0
    %121 = vmatpush2.msra.mxu0 0.0
    %122 = vmatprep.subr.mxu0 0.0
    %123 = vmatpush2.msra.mxu0 0.0
    %124 = vmatprep.subr.mxu0 0.0
    %125 = vmatpush2.msra.mxu0 0.0
    %126 = vmatprep.subr.mxu0 0.0
    %127 = vmatpush2.msra.mxu0 0.0
    %128 = vmatprep.subr.mxu0 0.0
    %129 = vmatpush2.msra.mxu0 0.0
    %130 = vmatprep.subr.mxu0 0.0
    %131 = vmatpush2.msra.mxu0 0.0
    %132 = vmatprep.subr.mxu0 0.0
    %133 = vmatpush2.msra.mxu0 0.0
    %134 = vmatprep.subr.mxu0 0.0
    %135 = vmatpush2.msra.mxu0 0.0
    %136 = vmatprep.subr.mxu0 0.0
    %137 = vmatpush2.msra.mxu0 0.0
    %138 = vmatprep.subr.mxu0 0.0
    %139 = vmatpush2.msra.mxu0 0.0
    %140 = vmatprep.subr.mxu0 0.0
    %141 = vmatpush2.msra.mxu0 0.0
    %142 = vmatprep.mubr.f32.mxu0 0.0
    %143 = vmatmul.mubr.f32.gmra.mxu0 %v55
    %v144 = vpop.f32.mrf.mxu0
    %v145 = vadd.f32 %v36, %v144
    %v146 = vpop.f32.mrf.mxu0
    %v147 = vadd.f32 %v40, %v146
    %148 = vmatprep.mubr.f32.mxu0 0.0
    %149 = vmatmul.mubr.f32.gmra.mxu0 %v58
    %v150 = vpop.f32.mrf.mxu0
    %v151 = vadd.f32 %v36, %v150
    %v152 = vpop.f32.mrf.mxu0
    %v153 = vadd.f32 %v40, %v152
    %154 = vmatprep.mubr.f32.mxu0 0.0
    %155 = vmatmul.mubr.f32.gmra.mxu0 %v61
    %v156 = vpop.f32.mrf.mxu0
    %v157 = vadd.f32 %v36, %v156
    %v158 = vpop.f32.mrf.mxu0
    %v159 = vadd.f32 %v40, %v158
    %160 = vmatprep.mubr.f32.mxu0 0.0
    %161 = vmatmul.mubr.f32.gmra.mxu0 %v64
    %v162 = vpop.f32.mrf.mxu0
    %v163 = vadd.f32 %v36, %v162
    %v164 = vpop.f32.mrf.mxu0
    %v165 = vadd.f32 %v40, %v164
    %166 = vmatprep.mubr.f32.mxu0 0.0
    %167 = vmatmul.mubr.f32.gmra.mxu0 %v67
    %v168 = vpop.f32.mrf.mxu0
    %v169 = vadd.f32 %v36, %v168
    %v170 = vpop.f32.mrf.mxu0
    %v171 = vadd.f32 %v40, %v170
    %172 = vmatprep.mubr.f32.mxu0 0.0
    %173 = vmatmul.mubr.f32.gmra.mxu0 %v70
    %v174 = vpop.f32.mrf.mxu0
    %v175 = vadd.f32 %v36, %v174
    %v176 = vpop.f32.mrf.mxu0
    %v177 = vadd.f32 %v40, %v176
    %178 = vmatprep.mubr.f32.mxu0 0.0
    %179 = vmatmul.mubr.f32.gmra.mxu0 %v73
    %v180 = vpop.f32.mrf.mxu0
    %v181 = vadd.f32 %v36, %v180
    %v182 = vpop.f32.mrf.mxu0
    %v183 = vadd.f32 %v40, %v182
    %184 = vmatprep.mubr.f32.mxu0 0.0
    %185 = vmatmul.mubr.f32.gmra.mxu0 %v76
    %v186 = vpop.f32.mrf.mxu0
    %v187 = vadd.f32 %v36, %v186
    %v188 = vpop.f32.mrf.mxu0
    %v189 = vadd.f32 %v40, %v188
    %190 = vdwg.mxu0
    %191 = vmatprep.subr.mxu0 0.0
    %192 = vmatpush1.msra.mxu0 0.0
    %193 = vmatprep.subr.mxu0 0.0
    %194 = vmatpush1.msra.mxu0 0.0
    %195 = vmatprep.subr.mxu0 0.0
    %196 = vmatpush1.msra.mxu0 0.0
    %197 = vmatprep.subr.mxu0 0.0
    %198 = vmatpush1.msra.mxu0 0.0
    %199 = vmatprep.subr.mxu0 0.0
    %200 = vmatpush1.msra.mxu0 0.0
    %201 = vmatprep.subr.mxu0 0.0
    %202 = vmatpush1.msra.mxu0 0.0
    %203 = vmatprep.subr.mxu0 0.0
    %204 = vmatpush1.msra.mxu0 0.0
    %205 = vmatprep.subr.mxu0 0.0
    %206 = vmatpush1.msra.mxu0 0.0
    %207 = vmatprep.subr.mxu0 0.0
    %208 = vmatpush1.msra.mxu0 0.0
    %209 = vmatprep.subr.mxu0 0.0
    %210 = vmatpush1.msra.mxu0 0.0
    %211 = vmatprep.subr.mxu0 0.0
    %212 = vmatpush1.msra.mxu0 0.0
    %213 = vmatprep.subr.mxu0 0.0
    %214 = vmatpush1.msra.mxu0 0.0
    %215 = vmatprep.subr.mxu0 0.0
    %216 = vmatpush1.msra.mxu0 0.0
    %217 = vmatprep.subr.mxu0 0.0
    %218 = vmatpush1.msra.mxu0 0.0
    %219 = vmatprep.subr.mxu0 %v30
    %220 = vmatpush1.msra.mxu0 %v29
    %221 = vmatprep.subr.mxu0 %v26
    %222 = vmatpush1.msra.mxu0 %v25
    %223 = vmatprep.subr.mxu0 0.0
    %224 = vmatpush2.msra.mxu0 0.0
    %225 = vmatprep.subr.mxu0 0.0
    %226 = vmatpush2.msra.mxu0 0.0
    %227 = vmatprep.subr.mxu0 0.0
    %228 = vmatpush2.msra.mxu0 0.0
    %229 = vmatprep.subr.mxu0 0.0
    %230 = vmatpush2.msra.mxu0 0.0
    %231 = vmatprep.subr.mxu0 0.0
    %232 = vmatpush2.msra.mxu0 0.0
    %233 = vmatprep.subr.mxu0 0.0
    %234 = vmatpush2.msra.mxu0 0.0
    %235 = vmatprep.subr.mxu0 0.0
    %236 = vmatpush2.msra.mxu0 0.0
    %237 = vmatprep.subr.mxu0 0.0
    %238 = vmatpush2.msra.mxu0 0.0
    %239 = vmatprep.subr.mxu0 0.0
    %240 = vmatpush2.msra.mxu0 0.0
    %241 = vmatprep.subr.mxu0 0.0
    %242 = vmatpush2.msra.mxu0 0.0
    %243 = vmatprep.subr.mxu0 0.0
    %244 = vmatpush2.msra.mxu0 0.0
    %245 = vmatprep.subr.mxu0 0.0
    %246 = vmatpush2.msra.mxu0 0.0
    %247 = vmatprep.subr.mxu0 0.0
    %248 = vmatpush2.msra.mxu0 0.0
    %249 = vmatprep.subr.mxu0 0.0
    %250 = vmatpush2.msra.mxu0 0.0
    %251 = vmatprep.subr.mxu0 0.0
    %252 = vmatpush2.msra.mxu0 0.0
    %253 = vmatprep.subr.mxu0 0.0
    %254 = vmatpush2.msra.mxu0 0.0
    %255 = vmatprep.mubr.f32.mxu0 0.0
    %256 = vmatmul.mubr.f32.gmra.mxu0 %v55
    %v257 = vpop.f32.mrf.mxu0
    %v258 = vadd.f32 %v44, %v257
    %v259 = vpop.f32.mrf.mxu0
    %v260 = vadd.f32 %v48, %v259
    %261 = vmatprep.mubr.f32.mxu0 0.0
    %262 = vmatmul.mubr.f32.gmra.mxu0 %v58
    %v263 = vpop.f32.mrf.mxu0
    %v264 = vadd.f32 %v44, %v263
    %v265 = vpop.f32.mrf.mxu0
    %v266 = vadd.f32 %v48, %v265
    %267 = vmatprep.mubr.f32.mxu0 0.0
    %268 = vmatmul.mubr.f32.gmra.mxu0 %v61
    %v269 = vpop.f32.mrf.mxu0
    %v270 = vadd.f32 %v44, %v269
    %v271 = vpop.f32.mrf.mxu0
    %v272 = vadd.f32 %v48, %v271
    %273 = vmatprep.mubr.f32.mxu0 0.0
    %274 = vmatmul.mubr.f32.gmra.mxu0 %v64
    %v275 = vpop.f32.mrf.mxu0
    %v276 = vadd.f32 %v44, %v275
    %v277 = vpop.f32.mrf.mxu0
    %v278 = vadd.f32 %v48, %v277
    %279 = vmatprep.mubr.f32.mxu0 0.0
    %280 = vmatmul.mubr.f32.gmra.mxu0 %v67
    %v281 = vpop.f32.mrf.mxu0
    %v282 = vadd.f32 %v44, %v281
    %v283 = vpop.f32.mrf.mxu0
    %v284 = vadd.f32 %v48, %v283
    %285 = vmatprep.mubr.f32.mxu0 0.0
    %286 = vmatmul.mubr.f32.gmra.mxu0 %v70
    %v287 = vpop.f32.mrf.mxu0
    %v288 = vadd.f32 %v44, %v287
    %v289 = vpop.f32.mrf.mxu0
    %v290 = vadd.f32 %v48, %v289
    %291 = vmatprep.mubr.f32.mxu0 0.0
    %292 = vmatmul.mubr.f32.gmra.mxu0 %v73
    %v293 = vpop.f32.mrf.mxu0
    %v294 = vadd.f32 %v44, %v293
    %v295 = vpop.f32.mrf.mxu0
    %v296 = vadd.f32 %v48, %v295
    %297 = vmatprep.mubr.f32.mxu0 0.0
    %298 = vmatmul.mubr.f32.gmra.mxu0 %v76
    %v299 = vpop.f32.mrf.mxu0
    %v300 = vadd.f32 %v44, %v299
    %v301 = vpop.f32.mrf.mxu0
    %v302 = vadd.f32 %v48, %v301
    %303 = vdwg.mxu0
    %304 = vst [vmem:[#allocation2] sm:$0xff] %v145
    %305 = vst [vmem:[#allocation2 + $0x8] sm:$0xff] %v147
    %306 = vst [vmem:[#allocation2 + $0x10] sm:$0xff] %v258
    %307 = vst [vmem:[#allocation2 + $0x18] sm:$0xff] %v260
    %308 = vst [vmem:[#allocation2 + $0x20] sm:$0xff] %v151
    %309 = vst [vmem:[#allocation2 + $0x28] sm:$0xff] %v153
    %310 = vst [vmem:[#allocation2 + $0x30] sm:$0xff] %v264
    %311 = vst [vmem:[#allocation2 + $0x38] sm:$0xff] %v266
    %312 = vst [vmem:[#allocation2 + $0x40] sm:$0xff] %v157
    %313 = vst [vmem:[#allocation2 + $0x48] sm:$0xff] %v159
    %314 = vst [vmem:[#allocation2 + $0x50] sm:$0xff] %v270
    %315 = vst [vmem:[#allocation2 + $0x58] sm:$0xff] %v272
    %316 = vst [vmem:[#allocation2 + $0x60] sm:$0xff] %v163
    %317 = vst [vmem:[#allocation2 + $0x68] sm:$0xff] %v165
    %318 = vst [vmem:[#allocation2 + $0x70] sm:$0xff] %v276
    %319 = vst [vmem:[#allocation2 + $0x78] sm:$0xff] %v278
    %320 = vst [vmem:[#allocation2 + $0x80] sm:$0xff] %v169
    %321 = vst [vmem:[#allocation2 + $0x88] sm:$0xff] %v171
    %322 = vst [vmem:[#allocation2 + $0x90] sm:$0xff] %v282
    %323 = vst [vmem:[#allocation2 + $0x98] sm:$0xff] %v284
    %324 = vst [vmem:[#allocation2 + $0xa0] sm:$0xff] %v175
    %325 = vst [vmem:[#allocation2 + $0xa8] sm:$0xff] %v177
    %326 = vst [vmem:[#allocation2 + $0xb0] sm:$0xff] %v288
    %327 = vst [vmem:[#allocation2 + $0xb8] sm:$0xff] %v290
    %328 = vst [vmem:[#allocation2 + $0xc0] sm:$0xff] %v181
    %329 = vst [vmem:[#allocation2 + $0xc8] sm:$0xff] %v183
    %330 = vst [vmem:[#allocation2 + $0xd0] sm:$0xff] %v294
    %331 = vst [vmem:[#allocation2 + $0xd8] sm:$0xff] %v296
    %332 = vst [vmem:[#allocation2 + $0xe0] sm:$0xff] %v187
    %333 = vst [vmem:[#allocation2 + $0xe8] sm:$0xff] %v189
    %334 = vst [vmem:[#allocation2 + $0xf0] sm:$0xff] %v300
    %335 = vst [vmem:[#allocation2 + $0xf8] sm:$0xff] %v302
    // Predicated region
    $region14: #{tpu_custom_call.1} parent=1 // pred_check
      _
    $region15: #{tpu_custom_call.1} parent=1 // pred_check_branch
      %337 = sbr.rel (0) target = $region17
    $region16: #{tpu_custom_call.1} parent=1 // pred_region
      %s339 = ssub.s32 4096, 4096
      %340 = vsyncadd [#allocation3], %s339
      %s341 = sshll.u32 [#allocation2], 4
      %s342 = int_to_ptr.vmem [resolvable:$true] %s341
      %347 = dma.vmem_to_hbm [thread:$0]  %s342, 4096, %s3, [#allocation3], 512, 512, 32
    $region17: #{tpu_custom_call.1} parent=1 // pred_fallthru
      _
    // Predicated region
    $region18: #{tpu_custom_call.1} parent=1 // pred_check
      _
    $region19: #{tpu_custom_call.1} parent=1 // pred_check_branch
      %349 = sbr.rel (0) target = $region21
    $region20: #{tpu_custom_call.1} parent=1 // pred_region
      %350 = dma.done [#allocation3], 4096
    $region21: #{tpu_custom_call.1} parent=1 // pred_fallthru
      _
    %351 = vsyncpa [#allocation3], 1

</llo_original>
